<compile_context>
chip_gen: v7x
topology: tpu7x:2x2x1
jax: 0.10.0
libtpu: 0.0.40
codegen_flags: <defaults>
</compile_context>

<pallas_src>
import functools

import numpy as np
import jax
import jax.numpy as jnp
from jax.experimental import pallas as pl
from jax.experimental.pallas import tpu as pltpu


def _round_up(v, m):
    return ((v + m - 1) // m) * m


def _pe_kernel(x_ref, o_ref, f_ref, *, freq_bands, include_input, mode,
               anchor_every):
    """Positional-encoding hot path.

    x_ref : (input_dim, tb)        channel-major input block (tokens on lanes)
    o_ref : (tb, out_dim)          interleaved output block (tokens on sublanes)
    f_ref : (out_pad8, tb_pad128)  f32 scratch slab, feature-major
    """
    x = x_ref[...].astype(jnp.float32)            # (d, tb) lane-dense over tokens
    d = x_ref.shape[0]
    tb = x_ref.shape[1]
    out_dim = o_ref.shape[1]

    row = 0

    def emit(vals):
        # Write one feature piece (d rows) into the feature-major slab.
        nonlocal row
        f_ref[row:row + d, :tb] = vals
        row += d

    if include_input:
        emit(x)

    nb = len(freq_bands)
    if nb:
        s = c = sd = cd = None
        for i, f in enumerate(freq_bands):
            if i == 0 or mode == "direct" or (i % anchor_every == 0):
                # Anchor band: true sin/cos (also bounds recurrence drift).
                theta = x * jnp.float32(f)
                s = jnp.sin(theta)
                c = jnp.cos(theta)
            elif mode == "double":
                # Exact frequency doubling: double-angle recurrence.
                s, c = 2.0 * s * c, 1.0 - 2.0 * s * s
            else:  # mode == "linear": constant spacing, angle-addition.
                s, c = s * cd + c * sd, c * cd - s * sd
            if i == 0 and mode == "linear" and nb > 1:
                delta = jnp.float32(freq_bands[1] - freq_bands[0])
                sd = jnp.sin(x * delta)
                cd = jnp.cos(x * delta)
            emit(s)
            emit(c)

    # Interleave to the final layout with one in-kernel transpose (XLU is idle
    # in this kernel).  Padded rows/lanes of the slab are sliced off below and
    # never mix with valid data, so they need no zeroing.
    ft = jnp.transpose(f_ref[...], (1, 0))        # (tb_pad, out_pad8)
    o_ref[...] = ft[:tb, :out_dim].astype(o_ref.dtype)


class EmbedderPallas:
    """JAX/Pallas equivalent of the PyTorch Embedder module."""

    def __init__(self, input_dim, max_freq_log2, N_freqs, log_sampling=True,
                 include_input=True, periodic_fns=None, out_dtype=None,
                 use_recurrence=True, anchor_every=4):
        # TODO(synk): custom `periodic_fns` have no Pallas equivalent here; only
        #             the reference default (sin, cos) pair is implemented.
        self.input_dim = input_dim
        self.include_input = include_input
        self.out_dtype = out_dtype
        self.anchor_every = max(1, int(anchor_every))

        n_fns = 2  # (sin, cos)
        self.out_dim = (input_dim if include_input else 0)
        self.out_dim += input_dim * N_freqs * n_fns

        if N_freqs > 0:
            if log_sampling:
                fb = 2.0 ** np.linspace(0.0, max_freq_log2, N_freqs)
            else:
                fb = np.linspace(2.0 ** 0.0, 2.0 ** max_freq_log2, N_freqs)
            self.freq_bands = [float(f) for f in fb]   # compile-time constants
        else:
            self.freq_bands = []

        # Pick the cheapest correct evaluation mode.
        mode = "direct"
        fb = self.freq_bands
        if use_recurrence and len(fb) >= 2:
            if all(fb[i + 1] == 2.0 * fb[i] for i in range(len(fb) - 1)):
                mode = "double"
            else:
                d0 = fb[1] - fb[0]
                tol = 1e-6 * max(abs(d0), 1e-30)
                if all(abs((fb[i + 1] - fb[i]) - d0) <= tol
                       for i in range(len(fb) - 1)):
                    mode = "linear"
        self.mode = mode

    def __call__(self, x, *, vmem_budget_bytes=24 * 1024 * 1024):
        assert x.shape[-1] == self.input_dim
        lead = x.shape[:-1]
        rows = int(np.prod(lead)) if lead else 1
        d = self.input_dim
        out_dim = self.out_dim
        out_dtype = jnp.dtype(self.out_dtype) if self.out_dtype is not None \
            else jnp.dtype(x.dtype)

        if rows == 0 or out_dim == 0:
            return jnp.zeros((*lead, out_dim), out_dtype)

        # Channel-major input (d, rows): tiny relative to the output, and it
        # keeps every in-kernel elementwise op lane-dense over tokens.
        xT = jnp.transpose(x.reshape(rows, d), (1, 0))

        out_pad8 = _round_up(out_dim, 8)
        in_b = jnp.dtype(x.dtype).itemsize
        out_b = out_dtype.itemsize

        # VMEM accounting (per token), including tile padding and temporaries:
        #   in  : 2 buffers x 8 sublanes x in_b
        #   out : 2 buffers x lane-padded out_dim x out_b
        #   slab: out_pad8 x 4   (f32 scratch)
        #   Ft  : lane-padded out_pad8 x 4 (transposed value before the store)
        #   misc elementwise temps (x, theta, s, c, sd, cd, ...)
        per_tok = (2 * 8 * in_b
                   + 2 * _round_up(out_dim, 128) * out_b
                   + out_pad8 * 4
                   + _round_up(out_pad8, 128) * 4
                   + 8 * 8 * 4)
        tb = int(vmem_budget_bytes // per_tok)

        if rows <= 256:
            tb = rows                      # single full-extent block
        else:
            tb = max(128, min(16384, (tb // 128) * 128))
            # Keep >= 2 grid steps so the "parallel" axis can shard across
            # v7x's two TensorCores even when everything fits one tile.
            half = _round_up(-(-rows // 2), 128)
            tb = min(tb, half)

        grid = (pl.cdiv(rows, tb),)
        tb_pad = _round_up(tb, 128)

        kernel = functools.partial(
            _pe_kernel,
            freq_bands=tuple(self.freq_bands),
            include_input=self.include_input,
            mode=self.mode,
            anchor_every=self.anchor_every,
        )

        vmem_limit = int(min(60 * 1024 * 1024,
                             max(32 * 1024 * 1024,
                                 vmem_budget_bytes + 16 * 1024 * 1024)))

        out2d = pl.pallas_call(
            kernel,
            out_shape=jax.ShapeDtypeStruct((rows, out_dim), out_dtype),
            grid_spec=pltpu.PrefetchScalarGridSpec(
                num_scalar_prefetch=0,
                grid=grid,
                in_specs=[
                    pl.BlockSpec((d, tb), lambda i: (0, i)),
                ],
                out_specs=pl.BlockSpec((tb, out_dim), lambda i: (i, 0)),
                scratch_shapes=[pltpu.VMEM((out_pad8, tb_pad), jnp.float32)],
            ),
            compiler_params=pltpu.CompilerParams(
                dimension_semantics=("parallel",),
                vmem_limit_bytes=vmem_limit,
            ),
        )(xT)

        # Pure metadata reshape (trailing-dim split), no extra HBM pass.
        return out2d.reshape(*lead, out_dim)


def _reference(x, freq_bands, include_input):
    """Pure-JAX reference matching the PyTorch forward."""
    out = []
    if include_input:
        out.append(x)
    for f in freq_bands:
        out.append(jnp.sin(x * f))
        out.append(jnp.cos(x * f))
    return jnp.concatenate(out, axis=-1)


if __name__ == "__main__":
    input_dim, max_freq_log2, n_freqs = 4, 3, 4
    key = jax.random.PRNGKey(0)
    x = jax.random.normal(key, (2, 8, input_dim), dtype=jnp.float32)

    # Log sampling (exact doublings -> double-angle recurrence path).
    emb_log = EmbedderPallas(input_dim, max_freq_log2, n_freqs,
                             log_sampling=True, include_input=True)
    out_log = jax.block_until_ready(emb_log(x))
    assert out_log.shape == (2, 8, emb_log.out_dim), out_log.shape
    ref_log = _reference(x, emb_log.freq_bands, emb_log.include_input)
    np.testing.assert_allclose(np.asarray(out_log), np.asarray(ref_log),
                               rtol=1e-5, atol=5e-5)

    # Linear sampling (constant delta -> angle-addition recurrence path).
    emb_lin = EmbedderPallas(input_dim, max_freq_log2, n_freqs,
                             log_sampling=False, include_input=True)
    out_lin = jax.block_until_ready(emb_lin(x))
    assert out_lin.shape == (2, 8, emb_lin.out_dim), out_lin.shape
    ref_lin = _reference(x, emb_lin.freq_bands, emb_lin.include_input)
    np.testing.assert_allclose(np.asarray(out_lin), np.asarray(ref_lin),
                               rtol=1e-5, atol=1e-4)

    print("KERNEL_OK")
</pallas_src>

<mosaic_0001>
module attributes {stable_mosaic.version = 11 : i64} {
  func.func @_pe_kernel(%arg0: i32, %arg1: memref<4x16xf32, #tpu.memory_space<vmem>>, %arg2: memref<16x36xf32, #tpu.memory_space<vmem>>, %arg3: memref<40x128xf32, #tpu.memory_space<vmem>>) attributes {dimension_semantics = [#tpu.dimension_semantics<parallel>], iteration_bounds = array<i64: 1>, scalar_prefetch = 0 : i64, scratch_operands = 1 : i64, tpu.core_type = #tpu.core_type<tc>, window_params = [{transform_indices = @transform_0, window_bounds = array<i64: 4, 16>}, {transform_indices = @transform_1, window_bounds = array<i64: 16, 36>}]} {
    %c0 = arith.constant 0 : index
    %c0_0 = arith.constant 0 : index
    %0 = vector.load %arg1[%c0, %c0_0] : memref<4x16xf32, #tpu.memory_space<vmem>>, vector<4x16xf32>
    %c0_1 = arith.constant 0 : index
    %c0_2 = arith.constant 0 : index
    %1 = vector.load %arg3[%c0_1, %c0_2] : memref<40x128xf32, #tpu.memory_space<vmem>>, vector<4x16xf32>
    tpu.vector_store %arg3[%c0_1, %c0_2], %0 {strides = array<i32>} : memref<40x128xf32, #tpu.memory_space<vmem>>, vector<4x16xf32>,
    %cst = arith.constant 1.000000e+00 : f32
    %2 = vector.broadcast %cst : f32 to vector<4x16xf32>
    %3 = arith.mulf %0, %2 : vector<4x16xf32>
    %4 = math.sin %3 : vector<4x16xf32>
    %5 = math.cos %3 : vector<4x16xf32>
    %c4 = arith.constant 4 : index
    %c0_3 = arith.constant 0 : index
    %6 = vector.load %arg3[%c4, %c0_3] : memref<40x128xf32, #tpu.memory_space<vmem>>, vector<4x16xf32>
    tpu.vector_store %arg3[%c4, %c0_3], %4 {strides = array<i32>} : memref<40x128xf32, #tpu.memory_space<vmem>>, vector<4x16xf32>,
    %c8 = arith.constant 8 : index
    %c0_4 = arith.constant 0 : index
    %7 = vector.load %arg3[%c8, %c0_4] : memref<40x128xf32, #tpu.memory_space<vmem>>, vector<4x16xf32>
    tpu.vector_store %arg3[%c8, %c0_4], %5 {strides = array<i32>} : memref<40x128xf32, #tpu.memory_space<vmem>>, vector<4x16xf32>,
    %cst_5 = arith.constant 2.000000e+00 : f32
    %8 = vector.broadcast %cst_5 : f32 to vector<4x16xf32>
    %9 = arith.mulf %8, %4 : vector<4x16xf32>
    %10 = arith.mulf %9, %5 : vector<4x16xf32>
    %cst_6 = arith.constant 2.000000e+00 : f32
    %11 = vector.broadcast %cst_6 : f32 to vector<4x16xf32>
    %12 = arith.mulf %11, %4 : vector<4x16xf32>
    %13 = arith.mulf %12, %4 : vector<4x16xf32>
    %cst_7 = arith.constant 1.000000e+00 : f32
    %14 = vector.broadcast %cst_7 : f32 to vector<4x16xf32>
    %15 = arith.subf %14, %13 : vector<4x16xf32>
    %c12 = arith.constant 12 : index
    %c0_8 = arith.constant 0 : index
    %16 = vector.load %arg3[%c12, %c0_8] : memref<40x128xf32, #tpu.memory_space<vmem>>, vector<4x16xf32>
    tpu.vector_store %arg3[%c12, %c0_8], %10 {strides = array<i32>} : memref<40x128xf32, #tpu.memory_space<vmem>>, vector<4x16xf32>,
    %c16 = arith.constant 16 : index
    %c0_9 = arith.constant 0 : index
    %17 = vector.load %arg3[%c16, %c0_9] : memref<40x128xf32, #tpu.memory_space<vmem>>, vector<4x16xf32>
    tpu.vector_store %arg3[%c16, %c0_9], %15 {strides = array<i32>} : memref<40x128xf32, #tpu.memory_space<vmem>>, vector<4x16xf32>,
    %cst_10 = arith.constant 2.000000e+00 : f32
    %18 = vector.broadcast %cst_10 : f32 to vector<4x16xf32>
    %19 = arith.mulf %18, %10 : vector<4x16xf32>
    %20 = arith.mulf %19, %15 : vector<4x16xf32>
    %cst_11 = arith.constant 2.000000e+00 : f32
    %21 = vector.broadcast %cst_11 : f32 to vector<4x16xf32>
    %22 = arith.mulf %21, %10 : vector<4x16xf32>
    %23 = arith.mulf %22, %10 : vector<4x16xf32>
    %cst_12 = arith.constant 1.000000e+00 : f32
    %24 = vector.broadcast %cst_12 : f32 to vector<4x16xf32>
    %25 = arith.subf %24, %23 : vector<4x16xf32>
    %c20 = arith.constant 20 : index
    %c0_13 = arith.constant 0 : index
    %26 = vector.load %arg3[%c20, %c0_13] : memref<40x128xf32, #tpu.memory_space<vmem>>, vector<4x16xf32>
    tpu.vector_store %arg3[%c20, %c0_13], %20 {strides = array<i32>} : memref<40x128xf32, #tpu.memory_space<vmem>>, vector<4x16xf32>,
    %c24 = arith.constant 24 : index
    %c0_14 = arith.constant 0 : index
    %27 = vector.load %arg3[%c24, %c0_14] : memref<40x128xf32, #tpu.memory_space<vmem>>, vector<4x16xf32>
    tpu.vector_store %arg3[%c24, %c0_14], %25 {strides = array<i32>} : memref<40x128xf32, #tpu.memory_space<vmem>>, vector<4x16xf32>,
    %cst_15 = arith.constant 2.000000e+00 : f32
    %28 = vector.broadcast %cst_15 : f32 to vector<4x16xf32>
    %29 = arith.mulf %28, %20 : vector<4x16xf32>
    %30 = arith.mulf %29, %25 : vector<4x16xf32>
    %cst_16 = arith.constant 2.000000e+00 : f32
    %31 = vector.broadcast %cst_16 : f32 to vector<4x16xf32>
    %32 = arith.mulf %31, %20 : vector<4x16xf32>
    %33 = arith.mulf %32, %20 : vector<4x16xf32>
    %cst_17 = arith.constant 1.000000e+00 : f32
    %34 = vector.broadcast %cst_17 : f32 to vector<4x16xf32>
    %35 = arith.subf %34, %33 : vector<4x16xf32>
    %c28 = arith.constant 28 : index
    %c0_18 = arith.constant 0 : index
    %36 = vector.load %arg3[%c28, %c0_18] : memref<40x128xf32, #tpu.memory_space<vmem>>, vector<4x16xf32>
    tpu.vector_store %arg3[%c28, %c0_18], %30 {strides = array<i32>} : memref<40x128xf32, #tpu.memory_space<vmem>>, vector<4x16xf32>,
    %c32 = arith.constant 32 : index
    %c0_19 = arith.constant 0 : index
    %37 = vector.load %arg3[%c32, %c0_19] : memref<40x128xf32, #tpu.memory_space<vmem>>, vector<4x16xf32>
    tpu.vector_store %arg3[%c32, %c0_19], %35 {strides = array<i32>} : memref<40x128xf32, #tpu.memory_space<vmem>>, vector<4x16xf32>,
    %c0_20 = arith.constant 0 : index
    %c0_21 = arith.constant 0 : index
    %38 = vector.load %arg3[%c0_20, %c0_21] : memref<40x128xf32, #tpu.memory_space<vmem>>, vector<40x128xf32>
    %39 = tpu.transpose %38, [1, 0] : vector<40x128xf32> -> vector<128x40xf32>
    %40 = vector.extract_strided_slice %39 {offsets = [0, 0], sizes = [16, 36], strides = [1, 1]} : vector<128x40xf32> to vector<16x36xf32>
    %c0_22 = arith.constant 0 : index
    %c0_23 = arith.constant 0 : index
    %41 = vector.load %arg2[%c0_22, %c0_23] : memref<16x36xf32, #tpu.memory_space<vmem>>, vector<16x36xf32>
    tpu.vector_store %arg2[%c0_22, %c0_23], %40 {strides = array<i32>} : memref<16x36xf32, #tpu.memory_space<vmem>>, vector<16x36xf32>,
    return
  }
  func.func @transform_0(%arg0: i32) -> (i32, i32) {
    %c0_i32 = arith.constant 0 : i32
    %c0_i32_0 = arith.constant 0 : i32
    return %c0_i32, %arg0 : i32, i32
  }
  func.func @transform_1(%arg0: i32) -> (i32, i32) {
    %c0_i32 = arith.constant 0 : i32
    %c0_i32_0 = arith.constant 0 : i32
    return %arg0, %c0_i32 : i32, i32
  }
}

</mosaic_0001>

<llo_original>
// kernel: tpu_custom_call.1
$region0: #{tpu_custom_call.1}
  #allocation0 [shape = 'u32[]', space=smem, size = 0x4, offset = 0x4, fixed_abs, tag = 'smem constant byte address 0x4 - core index']
  #allocation1 [shape = 'u32[144,128]{1,0:T(1,128)}', space=vmem, size = 0x12000, scoped, tag = 'internal scratch']
  #allocation2 [shape = 'f32[40,128]{1,0:T(8,128)}', space=vmem, size = 0x5000, scoped, tag = 'scratch operand']
  %s0 = inlined_call_operand.hbm [shape: f32[4,16], index: 0, kind: input, shape index: {}]
  %s1 = inlined_call_operand.hbm [shape: f32[16,36], index: 1, kind: output, shape index: {}]
  %s2 = sld [smem:[#allocation0]]
  $region18: #{tpu_custom_call.1} parent=0
    _
  %s4 = ssub.s32 1, %s2
  %s5 = scalar_select 0, %s4, %s2
  $region1: #{tpu_custom_call.1} parent=0
    #allocation3 [shape = 'u8[2048]{0}', space=vmem, size = 0x800, scoped, tag = 'input window, operand 0, single buffered']
    #allocation4 [shape = 's32[1]{0}', space=sflag, size = 0x4, scoped, tag = 'scoped memory for tpu_custom_call.1']
    #allocation5 [shape = 's32[1]{0}', space=sflag, size = 0x4, scoped, tag = 'scoped memory for tpu_custom_call.1']
    #allocation6 [shape = 'u8[8192]{0}', space=vmem, size = 0x2000, scoped, tag = 'output window, operand 0, single buffered']
    %6 = vsyncpa [#allocation4], 0
    %7 = vsyncpa [#allocation5], 0
    // Predicated region
    $region2: #{tpu_custom_call.1} parent=1 // pred_check
      _
    $region3: #{tpu_custom_call.1} parent=1 // pred_check_branch
      %9 = sbr.rel (0) target = $region5
    $region4: #{tpu_custom_call.1} parent=1 // pred_region
      %s11 = ssub.s32 64, 64
      %12 = vsyncadd [#allocation4], %s11
      %s14 = sshll.u32 [#allocation3], 4
      %s15 = int_to_ptr.vmem [resolvable:$true] %s14
      %17 = dma.hbm_to_vmem [thread:$0]  %s0, 64, %s15, [#allocation4]
    $region5: #{tpu_custom_call.1} parent=1 // pred_fallthru
      _
    // Predicated region
    $region6: #{tpu_custom_call.1} parent=1 // pred_check
      _
    $region7: #{tpu_custom_call.1} parent=1 // pred_check_branch
      %19 = sbr.rel (0) target = $region9
    $region8: #{tpu_custom_call.1} parent=1 // pred_region
      %20 = dma.done [#allocation4], 64
    $region9: #{tpu_custom_call.1} parent=1 // pred_fallthru
      _
    %v21 = vld [vmem:[#allocation3] sm:$0xf]
    %vm22 = vcmask 125952
    %23 = vst.msk [vmem:[#allocation2] sm:$0xf] %vm22, %v21
    %v24 = vand.u32 2147483647, %v21
    %vm25 = vcmp.le.f32.partialorder %v24, 0.7853982
    %vm26 = vcmp.lt.s32.totalorder %v21, 0
    %v27 = vand.u32 %v21, 2139095040
    %v28 = vshrl.u32 %v27, 23
    %v29 = vsub.s32 %v28, 127
    %v30 = vand.u32 2147483647, %v21
    %v31 = vand.u32 %v30, 8388607
    %v32 = vor.u32 %v31, 8388608
    %v33 = vsub.s32 0, %v32
    %v34 = vadd.s32 %v29, 1
    %vm35 = vcmp.gt.s32.totalorder %v34, 0
    %v36 = vsel %vm35, %v34, 0
    %v37 = vshrl.u32 %v36, 5
    %v38 = vand.u32 %v36, 31
    %v39 = vsub.s32 32, %v38
    %v40 = vshrl.u32 683565275, %v39
    %v41 = vshll.u32 683565275, %v38
    %v42 = vshrl.u32 2475754826, %v39
    %v43 = vor.u32 %v41, %v42
    %v44 = vshll.u32 2475754826, %v38
    %v45 = vshrl.u32 2131351028, %v39
    %v46 = vor.u32 %v44, %v45
    %v47 = vshll.u32 2131351028, %v38
    %v48 = vshrl.u32 2102212464, %v39
    %v49 = vor.u32 %v47, %v48
    %v50 = vshll.u32 2102212464, %v38
    %v51 = vshrl.u32 920167782, %v39
    %v52 = vor.u32 %v50, %v51
    %v53 = vshll.u32 920167782, %v38
    %v54 = vshrl.u32 1326507024, %v39
    %v55 = vor.u32 %v53, %v54
    %vm56 = vcmp.lt.s32.totalorder %v37, 1
    %vm57 = vcmp.lt.s32.totalorder %v37, 2
    %vm58 = vcmp.lt.s32.totalorder %v37, 3
    %vm59 = vcmp.lt.s32.totalorder %v37, 4
    %v60 = vsel %vm56, %v40, %v43
    %v61 = vsel %vm59, %v49, 2102212464
    %v62 = vsel %vm58, %v46, %v61
    %v63 = vsel %vm57, %v60, %v62
    %v64 = vsel %vm56, %v43, %v46
    %v65 = vsel %vm59, %v52, 920167782
    %v66 = vsel %vm58, %v49, %v65
    %v67 = vsel %vm57, %v64, %v66
    %v68 = vsel %vm56, %v46, %v49
    %v69 = vsel %vm59, %v55, 1326507024
    %v70 = vsel %vm58, %v52, %v69
    %v71 = vsel %vm57, %v68, %v70
    %v72 = vshll.u32 %v32, 8
    %v73 = vmul.u32.u64.compose %v72, %v71
    %v74 = vextract.low.u32 %v73
    %v75 = vextract.high.u32 %v73
    %v76 = vmul.u32.u64.compose %v72, %v67
    %v77 = vextract.low.u32 %v76
    %v78 = vextract.high.u32 %v76
    %v79 = vmul.u32 %v72, %v63
    %v80 = vadd.s32 %v75, %v77
    %vm81 = vc.u32 %v75, %v77
    %v82 = vadd.s32 %v78, 1
    %v83 = vsel %vm81, %v82, %v78
    %v84 = vadd.s32 %v79, %v83
    %v85 = vadd.s32 %v84, 536870912
    %v86 = vshrl.u32 %v85, 30
    %v87 = vshll.u32 %v86, 30
    %v88 = vsub.s32 %v84, %v87
    %vm89 = vcmp.lt.s32.totalorder %v88, 0
    %v90 = vsub.s32 0, %v88
    %v91 = vsel %vm89, %v90, %v88
    %v92 = vclz %v91
    %v93 = vsub.s32 %v92, 2
    %vm94 = vcmp.gt.s32.totalorder 0, %v93
    %v95 = vsel %vm94, 0, %v93
    %v96 = vsub.s32 32, %v95
    %v97 = vshll.u32 %v88, %v95
    %v98 = vshrl.u32 %v80, %v96
    %v99 = vor.u32 %v97, %v98
    %v100 = vsub.s32 4294967266, %v95
    %v101 = vadd.s32 %v100, 127
    %v102 = vshll.u32 %v101, 23
    %v103 = vor.u32 4788187, %v102
    %v104 = vand.u32 2147483647, %v103
    %v106 = vcvt.s32.f32 %v99
    %v107 = vmul.f32 %v106, %v104
    %v108 = vxor.u32 %v107, 2147483648
    %v109 = vsel %vm26, %v108, %v107
    %v110 = vsub.s32 4, %v86
    %v111 = vsel %vm26, %v110, %v86
    %v112 = vsel %vm25, %v21, %v109
    %v113 = vsel %vm25, 0, %v111
    %v114 = vcosq.f32.pop %v112
    %v115 = vsinq.f32.pop %v112
    %vm116 = vweird.f32 %v21
    %v117 = vadd.s32 %v113, 3
    %v118 = vand.u32 %v117, 3
    %vm119 = vcmp.lt.s32.totalorder %v118, 2
    %vm120 = vcmp.eq.s32.totalorder %v118, 0
    %v121 = vxor.u32 %v115, 2147483648
    %v122 = vsel %vm120, %v114, %v121
    %vm123 = vcmp.eq.s32.totalorder %v118, 2
    %v124 = vxor.u32 %v114, 2147483648
    %v125 = vsel %vm123, %v124, %v115
    %v126 = vsel %vm119, %v122, %v125
    %v127 = vsel %vm116, nan, %v126
    %v128 = vand.u32 2147483647, %v21
    %vm129 = vcmp.le.f32.partialorder %v128, 0.7853982
    %vm130 = vcmp.lt.s32.totalorder %v21, 0
    %v131 = vand.u32 %v21, 2139095040
    %v132 = vshrl.u32 %v131, 23
    %v133 = vsub.s32 %v132, 127
    %v134 = vand.u32 2147483647, %v21
    %v135 = vand.u32 %v134, 8388607
    %v136 = vor.u32 %v135, 8388608
    %v137 = vsub.s32 0, %v136
    %v138 = vadd.s32 %v133, 1
    %vm139 = vcmp.gt.s32.totalorder %v138, 0
    %v140 = vsel %vm139, %v138, 0
    %v141 = vshrl.u32 %v140, 5
    %v142 = vand.u32 %v140, 31
    %v143 = vsub.s32 32, %v142
    %v144 = vshrl.u32 683565275, %v143
    %v145 = vshll.u32 683565275, %v142
    %v146 = vshrl.u32 2475754826, %v143
    %v147 = vor.u32 %v145, %v146
    %v148 = vshll.u32 2475754826, %v142
    %v149 = vshrl.u32 2131351028, %v143
    %v150 = vor.u32 %v148, %v149
    %v151 = vshll.u32 2131351028, %v142
    %v152 = vshrl.u32 2102212464, %v143
    %v153 = vor.u32 %v151, %v152
    %v154 = vshll.u32 2102212464, %v142
    %v155 = vshrl.u32 920167782, %v143
    %v156 = vor.u32 %v154, %v155
    %v157 = vshll.u32 920167782, %v142
    %v158 = vshrl.u32 1326507024, %v143
    %v159 = vor.u32 %v157, %v158
    %vm160 = vcmp.lt.s32.totalorder %v141, 1
    %vm161 = vcmp.lt.s32.totalorder %v141, 2
    %vm162 = vcmp.lt.s32.totalorder %v141, 3
    %vm163 = vcmp.lt.s32.totalorder %v141, 4
    %v164 = vsel %vm160, %v144, %v147
    %v165 = vsel %vm163, %v153, 2102212464
    %v166 = vsel %vm162, %v150, %v165
    %v167 = vsel %vm161, %v164, %v166
    %v168 = vsel %vm160, %v147, %v150
    %v169 = vsel %vm163, %v156, 920167782
    %v170 = vsel %vm162, %v153, %v169
    %v171 = vsel %vm161, %v168, %v170
    %v172 = vsel %vm160, %v150, %v153
    %v173 = vsel %vm163, %v159, 1326507024
    %v174 = vsel %vm162, %v156, %v173
    %v175 = vsel %vm161, %v172, %v174
    %v176 = vshll.u32 %v136, 8
    %v177 = vmul.u32.u64.compose %v176, %v175
    %v178 = vextract.low.u32 %v177
    %v179 = vextract.high.u32 %v177
    %v180 = vmul.u32.u64.compose %v176, %v171
    %v181 = vextract.low.u32 %v180
    %v182 = vextract.high.u32 %v180
    %v183 = vmul.u32 %v176, %v167
    %v184 = vadd.s32 %v179, %v181
    %vm185 = vc.u32 %v179, %v181
    %v186 = vadd.s32 %v182, 1
    %v187 = vsel %vm185, %v186, %v182
    %v188 = vadd.s32 %v183, %v187
    %v189 = vadd.s32 %v188, 536870912
    %v190 = vshrl.u32 %v189, 30
    %v191 = vshll.u32 %v190, 30
    %v192 = vsub.s32 %v188, %v191
    %vm193 = vcmp.lt.s32.totalorder %v192, 0
    %v194 = vsub.s32 0, %v192
    %v195 = vsel %vm193, %v194, %v192
    %v196 = vclz %v195
    %v197 = vsub.s32 %v196, 2
    %vm198 = vcmp.gt.s32.totalorder 0, %v197
    %v199 = vsel %vm198, 0, %v197
    %v200 = vsub.s32 32, %v199
    %v201 = vshll.u32 %v192, %v199
    %v202 = vshrl.u32 %v184, %v200
    %v203 = vor.u32 %v201, %v202
    %v204 = vsub.s32 4294967266, %v199
    %v205 = vadd.s32 %v204, 127
    %v206 = vshll.u32 %v205, 23
    %v207 = vor.u32 4788187, %v206
    %v208 = vand.u32 2147483647, %v207
    %v210 = vcvt.s32.f32 %v203
    %v211 = vmul.f32 %v210, %v208
    %v212 = vxor.u32 %v211, 2147483648
    %v213 = vsel %vm130, %v212, %v211
    %v214 = vsub.s32 4, %v190
    %v215 = vsel %vm130, %v214, %v190
    %v216 = vsel %vm129, %v21, %v213
    %v217 = vsel %vm129, 0, %v215
    %v218 = vcosq.f32.pop %v216
    %v219 = vsinq.f32.pop %v216
    %vm220 = vweird.f32 %v21
    %v221 = vand.u32 %v217, 3
    %vm222 = vcmp.lt.s32.totalorder %v221, 2
    %vm223 = vcmp.eq.s32.totalorder %v221, 0
    %v224 = vxor.u32 %v219, 2147483648
    %v225 = vsel %vm223, %v218, %v224
    %vm226 = vcmp.eq.s32.totalorder %v221, 2
    %v227 = vxor.u32 %v218, 2147483648
    %v228 = vsel %vm226, %v227, %v219
    %v229 = vsel %vm222, %v225, %v228
    %v230 = vsel %vm220, nan, %v229
    %231 = vst.msk [vmem:[#allocation2 + $0x4] sm:$0xf] %vm22, %v127
    %232 = vst.msk [vmem:[#allocation2 + $0x8] sm:$0xf] %vm22, %v230
    %v233 = vmul.f32 %v127, 2.0
    %v234 = vmul.f32 %v233, %v230
    %v235 = vmul.f32 %v233, %v127
    %v236 = vsub.f32 1.0, %v235
    %237 = vst.msk [vmem:[#allocation2 + $0xc] sm:$0xf] %vm22, %v234
    %238 = vst.msk [vmem:[#allocation2 + $0x10] sm:$0xf] %vm22, %v236
    %v239 = vmul.f32 %v234, 2.0
    %v240 = vmul.f32 %v239, %v236
    %v241 = vmul.f32 %v239, %v234
    %v242 = vsub.f32 1.0, %v241
    %243 = vst.msk [vmem:[#allocation2 + $0x14] sm:$0xf] %vm22, %v240
    %244 = vst.msk [vmem:[#allocation2 + $0x18] sm:$0xf] %vm22, %v242
    %v245 = vmul.f32 %v240, 2.0
    %v246 = vmul.f32 %v245, %v242
    %v247 = vmul.f32 %v245, %v240
    %v248 = vsub.f32 1.0, %v247
    %249 = vst.msk [vmem:[#allocation2 + $0x1c] sm:$0xf] %vm22, %v246
    %250 = vst.msk [vmem:[#allocation2 + $0x20] sm:$0xf] %vm22, %v248
    %v251 = vld [vmem:[#allocation2] sm:$0xff]
    %v252 = vld [vmem:[#allocation2 + $0x8] sm:$0xff]
    %v253 = vld [vmem:[#allocation2 + $0x10] sm:$0xff]
    %v254 = vld [vmem:[#allocation2 + $0x18] sm:$0xff]
    %v255 = vld [vmem:[#allocation2 + $0x20] sm:$0xff]
    %256 = vxpose.xlu0.b32.start [1/16] %v251, 128
    %257 = vxpose.xlu0.b32.cont [2/16] %v252, 128
    %258 = vxpose.xlu0.b32.cont [3/16] %v253, 128
    %259 = vxpose.xlu0.b32.cont [4/16] %v254, 128
    %260 = vxpose.xlu0.b32.cont [5/16] %v255, 128
    %261 = vxpose.xlu0.b32.cont [6/16] 0.0, 128
    %262 = vxpose.xlu0.b32.cont [7/16] 0.0, 128
    %263 = vxpose.xlu0.b32.cont [8/16] 0.0, 128
    %264 = vxpose.xlu0.b32.cont [9/16] 0.0, 128
    %265 = vxpose.xlu0.b32.cont [10/16] 0.0, 128
    %266 = vxpose.xlu0.b32.cont [11/16] 0.0, 128
    %267 = vxpose.xlu0.b32.cont [12/16] 0.0, 128
    %268 = vxpose.xlu0.b32.cont [13/16] 0.0, 128
    %269 = vxpose.xlu0.b32.cont [14/16] 0.0, 128
    %270 = vxpose.xlu0.b32.cont [15/16] 0.0, 128
    %271 = vxpose.xlu0.b32.end [16/16] 0.0, 128
    %v272 = vpop.trf.xlu0
    %v273 = vpop.trf.xlu0
    %v274 = vpop.trf.xlu0
    %v275 = vpop.trf.xlu0
    %v276 = vpop.trf.xlu0
    %v277 = vpop.trf.xlu0
    %v278 = vpop.trf.xlu0
    %v279 = vpop.trf.xlu0
    %v280 = vpop.trf.xlu0
    %v281 = vpop.trf.xlu0
    %v282 = vpop.trf.xlu0
    %v283 = vpop.trf.xlu0
    %v284 = vpop.trf.xlu0
    %v285 = vpop.trf.xlu0
    %v286 = vpop.trf.xlu0
    %v287 = vpop.trf.xlu0
    %vm288 = vcmask 293888
    %289 = vst.msk [vmem:[#allocation6] sm:$0xff] %vm288, %v272
    %290 = vst.msk [vmem:[#allocation6 + $0x8] sm:$0xff] %vm288, %v273
    // Predicated region
    $region10: #{tpu_custom_call.1} parent=1 // pred_check
      _
    $region11: #{tpu_custom_call.1} parent=1 // pred_check_branch
      %292 = sbr.rel (0) target = $region13
    $region12: #{tpu_custom_call.1} parent=1 // pred_region
      %s294 = ssub.s32 256, 256
      %295 = vsyncadd [#allocation5], %s294
      %s296 = sshll.u32 [#allocation6], 4
      %s297 = int_to_ptr.vmem [resolvable:$true] %s296
      %302 = dma.vmem_to_hbm [thread:$0]  %s297, 256, %s1, [#allocation5], 128, 128, 8
    $region13: #{tpu_custom_call.1} parent=1 // pred_fallthru
      _
    // Predicated region
    $region14: #{tpu_custom_call.1} parent=1 // pred_check
      _
    $region15: #{tpu_custom_call.1} parent=1 // pred_check_branch
      %304 = sbr.rel (0) target = $region17
    $region16: #{tpu_custom_call.1} parent=1 // pred_region
      %305 = dma.done [#allocation5], 256
    $region17: #{tpu_custom_call.1} parent=1 // pred_fallthru
      _
    %306 = vsyncpa [#allocation4], 1
    %307 = vsyncpa [#allocation5], 1

</llo_original>
